<compile_context>
chip_gen: v7x
topology: tpu7x:2x2x1
jax: 0.10.0
libtpu: 0.0.40
codegen_flags: <defaults>
</compile_context>

<pallas_src>
import numpy as np

import jax
import jax.numpy as jnp
from jax import lax
from jax.experimental import pallas as pl
from jax.experimental.pallas import tpu as pltpu


def infer_emb_dim(n_categories: int) -> int:
    return int(min(50, round(1.6 * n_categories ** 0.56)))


def _round_up(x: int, m: int) -> int:
    return (x + m - 1) // m * m


def make_tabular_kernel(cat_total: int, n_cat_cols: int, k_chunk: int,
                        compute_dtype):
    """Kernel closed over static categorical geometry and compute dtype."""

    def kernel(xn_ref, xc_ref, w1n_ref, fused_ref, b1_ref, w2_ref, b2_ref,
               out_ref):
        xn = xn_ref[...]                                   # (num_dim, TB), compute dtype
        tb = xn.shape[1]

        # Numeric contribution to the hidden pre-activation, feature-major.
        h = jnp.dot(w1n_ref[...], xn,
                    preferred_element_type=jnp.float32)    # (H, TB) f32

        # Stacked one-hot x fused-table matmul, chunked over cat_total.
        # Bool mask OR-accumulated across columns, ONE cast per chunk.
        xc = xc_ref[...]                                   # (n_cat_cols, TB) int32
        for start in range(0, cat_total, k_chunk):
            csize = min(k_chunk, cat_total - start)
            iota = lax.broadcasted_iota(jnp.int32, (csize, tb), 0) + start
            mask = xc[0:1, :] == iota
            for c in range(1, n_cat_cols):
                mask = mask | (xc[c:c + 1, :] == iota)
            onehot = mask.astype(compute_dtype)            # single cast
            h = h + jnp.dot(fused_ref[:, start:start + csize], onehot,
                            preferred_element_type=jnp.float32)

        # Bias + ReLU in f32, second Linear on the MXU.
        h = jnp.maximum(h + b1_ref[...], 0.0)              # (H, TB) f32
        y = jnp.dot(w2_ref[...], h.astype(compute_dtype),
                    preferred_element_type=jnp.float32)    # (out_dim, TB)
        out_ref[...] = (y + b2_ref[...]).astype(out_ref.dtype)

    return kernel


def tabular_net_forward(x_num, x_cat, emb_tables, w1, b1, w2, b2, cat_dims, *,
                        block_b: int = 512, k_chunk: int = 256,
                        compute_dtype=jnp.float32):
    """Forward pass of TabularNet as one batch-tiled, feature-major pallas_call.

    block_b must be a power-of-two multiple of 128 (it is halved to create >=2
    grid steps when the batch allows, keeping lane-dense tiles).
    """
    B, num_dim = int(x_num.shape[0]), int(x_num.shape[1])
    cat_dims = [int(c) for c in cat_dims]
    n_cat_cols = len(cat_dims)
    assert n_cat_cols >= 1, "kernel path requires at least one categorical col"
    emb_dims = [int(t.shape[1]) for t in emb_tables]
    hidden = int(w1.shape[1])
    out_dim = int(w2.shape[1])
    cat_total = int(sum(cat_dims))
    f32 = jnp.float32
    cdt = compute_dtype
    itemsize = jnp.dtype(cdt).itemsize

    # ---- fold each embedding table into its W1 row-block (f32 fold) ----
    w1f = w1.astype(f32)
    w1_num = w1f[:num_dim]                                  # (num_dim, hidden)
    fused_parts = []
    row = num_dim
    for tbl, e in zip(emb_tables, emb_dims):
        fused_parts.append(tbl.astype(f32) @ w1f[row:row + e])
        row += e
    fused = jnp.concatenate(fused_parts, axis=0)            # (cat_total, hidden)

    # ---- feature-major weights; hidden padded only to a sublane multiple of 8 ----
    H = _round_up(hidden, 8)
    w1n_t = jnp.zeros((H, num_dim), f32).at[:hidden].set(w1_num.T).astype(cdt)
    fused_t = jnp.zeros((H, cat_total), f32).at[:hidden].set(fused.T).astype(cdt)
    b1_t = jnp.zeros((H, 1), f32).at[:hidden, 0].set(b1.reshape(-1).astype(f32))
    w2_t = jnp.zeros((out_dim, H), f32).at[:, :hidden].set(
        w2.T.astype(f32)).astype(cdt)
    b2_t = b2.reshape(out_dim, 1).astype(f32)

    # ---- collapse categorical columns into one stacked index space ----
    col_off = np.concatenate([[0], np.cumsum(cat_dims[:-1])]).astype(np.int32)
    max_id = np.asarray([c - 1 for c in cat_dims], dtype=np.int32)
    x_cat_c = jnp.clip(x_cat.astype(jnp.int32), 0, jnp.asarray(max_id)[None, :])
    x_cat_t = (x_cat_c + jnp.asarray(col_off)[None, :]).T    # (n_cat_cols, B)
    x_num_t = x_num.T.astype(cdt)                            # (num_dim, B)

    # ---- batch tiling: TB is the lane dim; prefer >=2 grid steps (v7x) ----
    if B <= 128:
        TB = _round_up(max(B, 1), 8)                         # single full-batch tile
    else:
        TB = block_b
        while TB > 128 and _round_up(B, TB) < 2 * TB:
            TB //= 2                                         # stays a multiple of 128
    B_pad = _round_up(B, TB)
    if B_pad != B:
        x_num_t = jnp.pad(x_num_t, ((0, 0), (0, B_pad - B)))
        x_cat_t = jnp.pad(x_cat_t, ((0, 0), (0, B_pad - B)), constant_values=-1)
    grid = (B_pad // TB,)

    k_chunk_eff = max(1, min(k_chunk, cat_total))
    kernel = make_tabular_kernel(cat_total, n_cat_cols, k_chunk_eff, cdt)

    # ---- explicit VMEM budget (resident weights + double-buffered batch tiles) ----
    w_bytes = 2 * ((H * num_dim + H * cat_total + out_dim * H) * itemsize
                   + (H + out_dim) * 4)                      # x2 worst case (no Buffered(1))
    tile_bytes = 2 * (num_dim * TB * itemsize + n_cat_cols * TB * 4
                      + out_dim * TB * 4)
    scratch_bytes = H * TB * 4 + k_chunk_eff * TB * 4        # h acc + one-hot chunk
    vmem_limit = int(min(max(w_bytes + tile_bytes + scratch_bytes + (8 << 20),
                             16 << 20), 64 << 20))

    flops = 2 * B_pad * (num_dim + cat_total) * H + 2 * B_pad * H * out_dim
    bytes_accessed = (B_pad * num_dim * itemsize + B_pad * n_cat_cols * 4
                      + (H * num_dim + H * cat_total + out_dim * H) * itemsize
                      + (H + out_dim) * 4
                      + B_pad * out_dim * 4)

    def build(use_buffered):
        def resident(shape):
            # Whole array, same (0, 0) index every grid step -> stays in VMEM;
            # Buffered(1) drops the pointless second buffer for these constants.
            if use_buffered and hasattr(pl, "Buffered"):
                return pl.BlockSpec(shape, lambda i: (0, 0),
                                    pipeline_mode=pl.Buffered(1))
            return pl.BlockSpec(shape, lambda i: (0, 0))

        return pl.pallas_call(
            kernel,
            out_shape=jax.ShapeDtypeStruct((out_dim, B_pad), f32),
            grid_spec=pltpu.PrefetchScalarGridSpec(
                num_scalar_prefetch=0,
                grid=grid,
                in_specs=[
                    pl.BlockSpec((num_dim, TB), lambda i: (0, i)),     # x_num^T tile
                    pl.BlockSpec((n_cat_cols, TB), lambda i: (0, i)),  # x_cat^T tile
                    resident((H, num_dim)),                            # W1[:num_dim]^T
                    resident((H, cat_total)),                          # fused tables^T
                    resident((H, 1)),                                  # b1
                    resident((out_dim, H)),                            # W2^T
                    resident((out_dim, 1)),                            # b2
                ],
                out_specs=pl.BlockSpec((out_dim, TB), lambda i: (0, i)),
            ),
            compiler_params=pltpu.CompilerParams(
                dimension_semantics=("parallel",),
                vmem_limit_bytes=vmem_limit),
            cost_estimate=pl.CostEstimate(
                flops=flops, transcendentals=0, bytes_accessed=bytes_accessed),
        )

    args = (x_num_t, x_cat_t, w1n_t, fused_t, b1_t, w2_t, b2_t)
    try:
        out_t = build(True)(*args)
    except Exception:
        # pipeline_mode=Buffered(1) not supported by this jax version -> default.
        out_t = build(False)(*args)

    return out_t[:, :B].T                                    # (B, out_dim)


if __name__ == "__main__":
    # ---- configuration (small, consistent with the module) ----
    batch = 8
    num_dim = 4
    cat_dims = [7, 13]                                  # two categorical features
    emb_dims = [infer_emb_dim(c) for c in cat_dims]     # [5, 7]
    emb_total = sum(emb_dims)                           # 12
    in_dim = num_dim + emb_total                        # 16
    hidden = 32
    out_dim = 8

    key = jax.random.PRNGKey(0)
    keys = jax.random.split(key, 10)

    # ---- deterministic parameter init ----
    emb_tables = []
    for i, (n_cat, e_dim) in enumerate(zip(cat_dims, emb_dims)):
        emb_tables.append(
            jax.random.normal(keys[i], (n_cat, e_dim), dtype=jnp.float32) * 0.1)
    w1 = jax.random.normal(keys[4], (in_dim, hidden), dtype=jnp.float32) * 0.1
    b1 = jax.random.normal(keys[5], (1, hidden), dtype=jnp.float32) * 0.01
    w2 = jax.random.normal(keys[6], (hidden, out_dim), dtype=jnp.float32) * 0.1
    b2 = jax.random.normal(keys[7], (1, out_dim), dtype=jnp.float32) * 0.01

    # ---- deterministic example inputs ----
    x_num = jax.random.normal(keys[8], (batch, num_dim), dtype=jnp.float32)
    cat_keys = jax.random.split(keys[9], len(cat_dims))
    x_cat = jnp.concatenate(
        [jax.random.randint(cat_keys[i], (batch, 1), 0, n, dtype=jnp.int32)
         for i, n in enumerate(cat_dims)], axis=1)

    # ---- pure-JAX reference (original embedding + concat + MLP semantics) ----
    embs = [emb_tables[i][x_cat[:, i]] for i in range(len(cat_dims))]
    x_ref = jnp.concatenate([x_num] + embs, axis=1)
    h_ref = jnp.maximum(x_ref @ w1 + b1, 0.0)
    y_ref = h_ref @ w2 + b2

    # ---- f32 datapath: must match the reference tightly ----
    out = tabular_net_forward(x_num, x_cat, emb_tables, w1, b1, w2, b2, cat_dims)
    out = jax.block_until_ready(out)
    assert out.shape == (batch, out_dim)
    assert jnp.allclose(out, y_ref, atol=1e-5, rtol=1e-5)

    # ---- bf16 MXU-operand path (production default), looser tolerance ----
    out_bf16 = tabular_net_forward(x_num, x_cat, emb_tables, w1, b1, w2, b2,
                                   cat_dims, compute_dtype=jnp.bfloat16)
    out_bf16 = jax.block_until_ready(out_bf16)
    assert out_bf16.shape == (batch, out_dim)
    assert jnp.allclose(out_bf16, y_ref, atol=3e-2, rtol=3e-2)

    print("KERNEL_OK")
</pallas_src>

<mosaic_0001>
module attributes {stable_mosaic.version = 11 : i64} {
  func.func @kernel(%arg0: i32, %arg1: memref<4x8xf32, #tpu.memory_space<vmem>>, %arg2: memref<2x8xi32, #tpu.memory_space<vmem>>, %arg3: memref<32x4xf32, #tpu.memory_space<vmem>>, %arg4: memref<32x20xf32, #tpu.memory_space<vmem>>, %arg5: memref<32x1xf32, #tpu.memory_space<vmem>>, %arg6: memref<8x32xf32, #tpu.memory_space<vmem>>, %arg7: memref<8x1xf32, #tpu.memory_space<vmem>>, %arg8: memref<8x8xf32, #tpu.memory_space<vmem>>) attributes {dimension_semantics = [#tpu.dimension_semantics<parallel>], iteration_bounds = array<i64: 1>, scalar_prefetch = 0 : i64, scratch_operands = 0 : i64, tpu.core_type = #tpu.core_type<tc>, window_params = [{transform_indices = @transform_0, window_bounds = array<i64: 4, 8>}, {transform_indices = @transform_1, window_bounds = array<i64: 2, 8>}, {pipeline_mode = #tpu.pipeline_mode<synchronous>, transform_indices = @transform_2, window_bounds = array<i64: 32, 4>}, {pipeline_mode = #tpu.pipeline_mode<synchronous>, transform_indices = @transform_3, window_bounds = array<i64: 32, 20>}, {pipeline_mode = #tpu.pipeline_mode<synchronous>, transform_indices = @transform_4, window_bounds = array<i64: 32, 1>}, {pipeline_mode = #tpu.pipeline_mode<synchronous>, transform_indices = @transform_5, window_bounds = array<i64: 8, 32>}, {pipeline_mode = #tpu.pipeline_mode<synchronous>, transform_indices = @transform_6, window_bounds = array<i64: 8, 1>}, {transform_indices = @transform_7, window_bounds = array<i64: 8, 8>}]} {
    %c0 = arith.constant 0 : index
    %c0_0 = arith.constant 0 : index
    %0 = vector.load %arg1[%c0, %c0_0] : memref<4x8xf32, #tpu.memory_space<vmem>>, vector<4x8xf32>
    %c0_1 = arith.constant 0 : index
    %c0_2 = arith.constant 0 : index
    %1 = vector.load %arg3[%c0_1, %c0_2] : memref<32x4xf32, #tpu.memory_space<vmem>>, vector<32x4xf32>
    %cst = arith.constant dense<0.000000e+00> : vector<32x8xf32>
    %2 = tpu.matmul %1, %0, %cst {dimension_numbers = #tpu.dot_dimension_numbers<[1], [0], [0], [1], [0, 0, 1, 1], [], []>} : vector<32x4xf32>, vector<4x8xf32>, vector<32x8xf32> -> vector<32x8xf32>
    %c0_3 = arith.constant 0 : index
    %c0_4 = arith.constant 0 : index
    %3 = vector.load %arg2[%c0_3, %c0_4] : memref<2x8xi32, #tpu.memory_space<vmem>>, vector<2x8xi32>
    %4 = tpu.iota {dimensions = array<i32: 0>} : vector<20x8xi32>
    %c0_i32 = arith.constant 0 : i32
    %5 = vector.broadcast %c0_i32 : i32 to vector<20x8xi32>
    %6 = arith.addi %4, %5 : vector<20x8xi32>
    %7 = vector.extract_strided_slice %3 {offsets = [0, 0], sizes = [1, 8], strides = [1, 1]} : vector<2x8xi32> to vector<1x8xi32>
    %8 = vector.broadcast %7 : vector<1x8xi32> to vector<20x8xi32>
    %9 = arith.cmpi eq, %8, %6 : vector<20x8xi32>
    %10 = vector.extract_strided_slice %3 {offsets = [1, 0], sizes = [1, 8], strides = [1, 1]} : vector<2x8xi32> to vector<1x8xi32>
    %11 = vector.broadcast %10 : vector<1x8xi32> to vector<20x8xi32>
    %12 = arith.cmpi eq, %11, %6 : vector<20x8xi32>
    %13 = arith.ori %9, %12 : vector<20x8xi1>
    %14 = arith.extui %13 : vector<20x8xi1> to vector<20x8xi32>
    %15 = arith.sitofp %14 : vector<20x8xi32> to vector<20x8xf32>
    %c0_5 = arith.constant 0 : index
    %c0_6 = arith.constant 0 : index
    %16 = vector.load %arg4[%c0_5, %c0_6] : memref<32x20xf32, #tpu.memory_space<vmem>>, vector<32x20xf32>
    %cst_7 = arith.constant dense<0.000000e+00> : vector<32x8xf32>
    %17 = tpu.matmul %16, %15, %cst_7 {dimension_numbers = #tpu.dot_dimension_numbers<[1], [0], [0], [1], [0, 0, 1, 1], [], []>} : vector<32x20xf32>, vector<20x8xf32>, vector<32x8xf32> -> vector<32x8xf32>
    %18 = arith.addf %2, %17 : vector<32x8xf32>
    %c0_8 = arith.constant 0 : index
    %c0_9 = arith.constant 0 : index
    %19 = vector.load %arg5[%c0_8, %c0_9] : memref<32x1xf32, #tpu.memory_space<vmem>>, vector<32x1xf32>
    %20 = vector.broadcast %19 : vector<32x1xf32> to vector<32x8xf32>
    %21 = arith.addf %18, %20 : vector<32x8xf32>
    %cst_10 = arith.constant 0.000000e+00 : f32
    %22 = vector.broadcast %cst_10 : f32 to vector<32x8xf32>
    %23 = arith.maximumf %21, %22 : vector<32x8xf32>
    %c0_11 = arith.constant 0 : index
    %c0_12 = arith.constant 0 : index
    %24 = vector.load %arg6[%c0_11, %c0_12] : memref<8x32xf32, #tpu.memory_space<vmem>>, vector<8x32xf32>
    %cst_13 = arith.constant dense<0.000000e+00> : vector<8x8xf32>
    %25 = tpu.matmul %24, %23, %cst_13 {dimension_numbers = #tpu.dot_dimension_numbers<[1], [0], [0], [1], [0, 0, 1, 1], [], []>} : vector<8x32xf32>, vector<32x8xf32>, vector<8x8xf32> -> vector<8x8xf32>
    %c0_14 = arith.constant 0 : index
    %c0_15 = arith.constant 0 : index
    %26 = vector.load %arg7[%c0_14, %c0_15] : memref<8x1xf32, #tpu.memory_space<vmem>>, vector<8x1xf32>
    %27 = vector.broadcast %26 : vector<8x1xf32> to vector<8x8xf32>
    %28 = arith.addf %25, %27 : vector<8x8xf32>
    %c0_16 = arith.constant 0 : index
    %c0_17 = arith.constant 0 : index
    %29 = vector.load %arg8[%c0_16, %c0_17] : memref<8x8xf32, #tpu.memory_space<vmem>>, vector<8x8xf32>
    tpu.vector_store %arg8[%c0_16, %c0_17], %28 {strides = array<i32>} : memref<8x8xf32, #tpu.memory_space<vmem>>, vector<8x8xf32>,
    return
  }
  func.func @transform_0(%arg0: i32) -> (i32, i32) {
    %c0_i32 = arith.constant 0 : i32
    %c0_i32_0 = arith.constant 0 : i32
    return %c0_i32, %arg0 : i32, i32
  }
  func.func @transform_1(%arg0: i32) -> (i32, i32) {
    %c0_i32 = arith.constant 0 : i32
    %c0_i32_0 = arith.constant 0 : i32
    return %c0_i32, %arg0 : i32, i32
  }
  func.func @transform_2(%arg0: i32) -> (i32, i32) {
    %c0_i32 = arith.constant 0 : i32
    %c0_i32_0 = arith.constant 0 : i32
    %c0_i32_1 = arith.constant 0 : i32
    return %c0_i32, %c0_i32_0 : i32, i32
  }
  func.func @transform_3(%arg0: i32) -> (i32, i32) {
    %c0_i32 = arith.constant 0 : i32
    %c0_i32_0 = arith.constant 0 : i32
    %c0_i32_1 = arith.constant 0 : i32
    return %c0_i32, %c0_i32_0 : i32, i32
  }
  func.func @transform_4(%arg0: i32) -> (i32, i32) {
    %c0_i32 = arith.constant 0 : i32
    %c0_i32_0 = arith.constant 0 : i32
    %c0_i32_1 = arith.constant 0 : i32
    return %c0_i32, %c0_i32_0 : i32, i32
  }
  func.func @transform_5(%arg0: i32) -> (i32, i32) {
    %c0_i32 = arith.constant 0 : i32
    %c0_i32_0 = arith.constant 0 : i32
    %c0_i32_1 = arith.constant 0 : i32
    return %c0_i32, %c0_i32_0 : i32, i32
  }
  func.func @transform_6(%arg0: i32) -> (i32, i32) {
    %c0_i32 = arith.constant 0 : i32
    %c0_i32_0 = arith.constant 0 : i32
    %c0_i32_1 = arith.constant 0 : i32
    return %c0_i32, %c0_i32_0 : i32, i32
  }
  func.func @transform_7(%arg0: i32) -> (i32, i32) {
    %c0_i32 = arith.constant 0 : i32
    %c0_i32_0 = arith.constant 0 : i32
    return %c0_i32, %arg0 : i32, i32
  }
}

module attributes {stable_mosaic.version = 11 : i64} {
  func.func @kernel(%arg0: i32, %arg1: memref<4x8xf32, #tpu.memory_space<vmem>>, %arg2: memref<2x8xi32, #tpu.memory_space<vmem>>, %arg3: memref<32x4xf32, #tpu.memory_space<vmem>>, %arg4: memref<32x20xf32, #tpu.memory_space<vmem>>, %arg5: memref<32x1xf32, #tpu.memory_space<vmem>>, %arg6: memref<8x32xf32, #tpu.memory_space<vmem>>, %arg7: memref<8x1xf32, #tpu.memory_space<vmem>>, %arg8: memref<8x8xf32, #tpu.memory_space<vmem>>) attributes {dimension_semantics = [#tpu.dimension_semantics<parallel>], iteration_bounds = array<i64: 1>, scalar_prefetch = 0 : i64, scratch_operands = 0 : i64, tpu.core_type = #tpu.core_type<tc>, window_params = [{transform_indices = @transform_0, window_bounds = array<i64: 4, 8>}, {transform_indices = @transform_1, window_bounds = array<i64: 2, 8>}, {pipeline_mode = #tpu.pipeline_mode<synchronous>, transform_indices = @transform_2, window_bounds = array<i64: 32, 4>}, {pipeline_mode = #tpu.pipeline_mode<synchronous>, transform_indices = @transform_3, window_bounds = array<i64: 32, 20>}, {pipeline_mode = #tpu.pipeline_mode<synchronous>, transform_indices = @transform_4, window_bounds = array<i64: 32, 1>}, {pipeline_mode = #tpu.pipeline_mode<synchronous>, transform_indices = @transform_5, window_bounds = array<i64: 8, 32>}, {pipeline_mode = #tpu.pipeline_mode<synchronous>, transform_indices = @transform_6, window_bounds = array<i64: 8, 1>}, {transform_indices = @transform_7, window_bounds = array<i64: 8, 8>}]} {
    %c0 = arith.constant 0 : index
    %c0_0 = arith.constant 0 : index
    %0 = vector.load %arg1[%c0, %c0_0] : memref<4x8xf32, #tpu.memory_space<vmem>>, vector<4x8xf32>
    %c0_1 = arith.constant 0 : index
    %c0_2 = arith.constant 0 : index
    %1 = vector.load %arg3[%c0_1, %c0_2] : memref<32x4xf32, #tpu.memory_space<vmem>>, vector<32x4xf32>
    %cst = arith.constant dense<0.000000e+00> : vector<32x8xf32>
    %2 = tpu.matmul %1, %0, %cst {dimension_numbers = #tpu.dot_dimension_numbers<[1], [0], [0], [1], [0, 0, 1, 1], [], []>} : vector<32x4xf32>, vector<4x8xf32>, vector<32x8xf32> -> vector<32x8xf32>
    %c0_3 = arith.constant 0 : index
    %c0_4 = arith.constant 0 : index
    %3 = vector.load %arg2[%c0_3, %c0_4] : memref<2x8xi32, #tpu.memory_space<vmem>>, vector<2x8xi32>
    %4 = tpu.iota {dimensions = array<i32: 0>} : vector<20x8xi32>
    %c0_i32 = arith.constant 0 : i32
    %5 = vector.broadcast %c0_i32 : i32 to vector<20x8xi32>
    %6 = arith.addi %4, %5 : vector<20x8xi32>
    %7 = vector.extract_strided_slice %3 {offsets = [0, 0], sizes = [1, 8], strides = [1, 1]} : vector<2x8xi32> to vector<1x8xi32>
    %8 = vector.broadcast %7 : vector<1x8xi32> to vector<20x8xi32>
    %9 = arith.cmpi eq, %8, %6 : vector<20x8xi32>
    %10 = vector.extract_strided_slice %3 {offsets = [1, 0], sizes = [1, 8], strides = [1, 1]} : vector<2x8xi32> to vector<1x8xi32>
    %11 = vector.broadcast %10 : vector<1x8xi32> to vector<20x8xi32>
    %12 = arith.cmpi eq, %11, %6 : vector<20x8xi32>
    %13 = arith.ori %9, %12 : vector<20x8xi1>
    %14 = arith.extui %13 : vector<20x8xi1> to vector<20x8xi32>
    %15 = arith.sitofp %14 : vector<20x8xi32> to vector<20x8xf32>
    %c0_5 = arith.constant 0 : index
    %c0_6 = arith.constant 0 : index
    %16 = vector.load %arg4[%c0_5, %c0_6] : memref<32x20xf32, #tpu.memory_space<vmem>>, vector<32x20xf32>
    %cst_7 = arith.constant dense<0.000000e+00> : vector<32x8xf32>
    %17 = tpu.matmul %16, %15, %cst_7 {dimension_numbers = #tpu.dot_dimension_numbers<[1], [0], [0], [1], [0, 0, 1, 1], [], []>} : vector<32x20xf32>, vector<20x8xf32>, vector<32x8xf32> -> vector<32x8xf32>
    %18 = arith.addf %2, %17 : vector<32x8xf32>
    %c0_8 = arith.constant 0 : index
    %c0_9 = arith.constant 0 : index
    %19 = vector.load %arg5[%c0_8, %c0_9] : memref<32x1xf32, #tpu.memory_space<vmem>>, vector<32x1xf32>
    %20 = vector.broadcast %19 : vector<32x1xf32> to vector<32x8xf32>
    %21 = arith.addf %18, %20 : vector<32x8xf32>
    %cst_10 = arith.constant 0.000000e+00 : f32
    %22 = vector.broadcast %cst_10 : f32 to vector<32x8xf32>
    %23 = arith.maximumf %21, %22 : vector<32x8xf32>
    %c0_11 = arith.constant 0 : index
    %c0_12 = arith.constant 0 : index
    %24 = vector.load %arg6[%c0_11, %c0_12] : memref<8x32xf32, #tpu.memory_space<vmem>>, vector<8x32xf32>
    %cst_13 = arith.constant dense<0.000000e+00> : vector<8x8xf32>
    %25 = tpu.matmul %24, %23, %cst_13 {dimension_numbers = #tpu.dot_dimension_numbers<[1], [0], [0], [1], [0, 0, 1, 1], [], []>} : vector<8x32xf32>, vector<32x8xf32>, vector<8x8xf32> -> vector<8x8xf32>
    %c0_14 = arith.constant 0 : index
    %c0_15 = arith.constant 0 : index
    %26 = vector.load %arg7[%c0_14, %c0_15] : memref<8x1xf32, #tpu.memory_space<vmem>>, vector<8x1xf32>
    %27 = vector.broadcast %26 : vector<8x1xf32> to vector<8x8xf32>
    %28 = arith.addf %25, %27 : vector<8x8xf32>
    %c0_16 = arith.constant 0 : index
    %c0_17 = arith.constant 0 : index
    %29 = vector.load %arg8[%c0_16, %c0_17] : memref<8x8xf32, #tpu.memory_space<vmem>>, vector<8x8xf32>
    tpu.vector_store %arg8[%c0_16, %c0_17], %28 {strides = array<i32>} : memref<8x8xf32, #tpu.memory_space<vmem>>, vector<8x8xf32>,
    return
  }
  func.func @transform_0(%arg0: i32) -> (i32, i32) {
    %c0_i32 = arith.constant 0 : i32
    %c0_i32_0 = arith.constant 0 : i32
    return %c0_i32, %arg0 : i32, i32
  }
  func.func @transform_1(%arg0: i32) -> (i32, i32) {
    %c0_i32 = arith.constant 0 : i32
    %c0_i32_0 = arith.constant 0 : i32
    return %c0_i32, %arg0 : i32, i32
  }
  func.func @transform_2(%arg0: i32) -> (i32, i32) {
    %c0_i32 = arith.constant 0 : i32
    %c0_i32_0 = arith.constant 0 : i32
    %c0_i32_1 = arith.constant 0 : i32
    return %c0_i32, %c0_i32_0 : i32, i32
  }
  func.func @transform_3(%arg0: i32) -> (i32, i32) {
    %c0_i32 = arith.constant 0 : i32
    %c0_i32_0 = arith.constant 0 : i32
    %c0_i32_1 = arith.constant 0 : i32
    return %c0_i32, %c0_i32_0 : i32, i32
  }
  func.func @transform_4(%arg0: i32) -> (i32, i32) {
    %c0_i32 = arith.constant 0 : i32
    %c0_i32_0 = arith.constant 0 : i32
    %c0_i32_1 = arith.constant 0 : i32
    return %c0_i32, %c0_i32_0 : i32, i32
  }
  func.func @transform_5(%arg0: i32) -> (i32, i32) {
    %c0_i32 = arith.constant 0 : i32
    %c0_i32_0 = arith.constant 0 : i32
    %c0_i32_1 = arith.constant 0 : i32
    return %c0_i32, %c0_i32_0 : i32, i32
  }
  func.func @transform_6(%arg0: i32) -> (i32, i32) {
    %c0_i32 = arith.constant 0 : i32
    %c0_i32_0 = arith.constant 0 : i32
    %c0_i32_1 = arith.constant 0 : i32
    return %c0_i32, %c0_i32_0 : i32, i32
  }
  func.func @transform_7(%arg0: i32) -> (i32, i32) {
    %c0_i32 = arith.constant 0 : i32
    %c0_i32_0 = arith.constant 0 : i32
    return %c0_i32, %arg0 : i32, i32
  }
}

</mosaic_0001>

<llo_original>
// kernel: tpu_custom_call.1
$region0: #{tpu_custom_call.1}
  #allocation0 [shape = 'u32[]', space=smem, size = 0x4, offset = 0x4, fixed_abs, tag = 'smem constant byte address 0x4 - core index']
  #allocation1 [shape = 'u32[144,128]{1,0:T(1,128)}', space=vmem, size = 0x12000, scoped, tag = 'internal scratch']
  %s0 = inlined_call_operand.vmem [shape: f32[4,8], index: 0, kind: input, shape index: {}]
  %s1 = inlined_call_operand.vmem [shape: s32[2,8], index: 1, kind: input, shape index: {}]
  %s2 = inlined_call_operand.vmem [shape: f32[32,4], index: 2, kind: input, shape index: {}]
  %s3 = inlined_call_operand.vmem [shape: f32[32,20], index: 3, kind: input, shape index: {}]
  %s4 = inlined_call_operand.vmem [shape: f32[32,1], index: 4, kind: input, shape index: {}]
  %s5 = inlined_call_operand.vmem [shape: f32[8,32], index: 5, kind: input, shape index: {}]
  %s6 = inlined_call_operand.vmem [shape: f32[8,1], index: 6, kind: input, shape index: {}]
  %s7 = inlined_call_operand.hbm [shape: f32[8,8], index: 7, kind: output, shape index: {}]
  %s8 = sld [smem:[#allocation0]]
  $region38: #{tpu_custom_call.1} parent=0
    _
  %s10 = ssub.s32 1, %s8
  %s11 = scalar_select 0, %s10, %s8
  $region1: #{tpu_custom_call.1} parent=0
    #allocation2 [shape = 'u8[4096]{0}', space=vmem, size = 0x1000, scoped, tag = 'output window, operand 0, single buffered']
    #allocation3 [shape = 's32[1]{0}', space=sflag, size = 0x4, scoped, tag = 'scoped memory for tpu_custom_call.1']
    %12 = vsyncpa [#allocation3], 0
    // Predicated region
    $region2: #{tpu_custom_call.1} parent=1 // pred_check
      _
    $region3: #{tpu_custom_call.1} parent=1 // pred_check_branch
      %14 = sbr.rel (0) target = $region5
    $region4: #{tpu_custom_call.1} parent=1 // pred_region
      _
    $region5: #{tpu_custom_call.1} parent=1 // pred_fallthru
      _
    // Predicated region
    $region6: #{tpu_custom_call.1} parent=1 // pred_check
      _
    $region7: #{tpu_custom_call.1} parent=1 // pred_check_branch
      %16 = sbr.rel (0) target = $region9
    $region8: #{tpu_custom_call.1} parent=1 // pred_region
      _
    $region9: #{tpu_custom_call.1} parent=1 // pred_fallthru
      _
    // Predicated region
    $region10: #{tpu_custom_call.1} parent=1 // pred_check
      _
    $region11: #{tpu_custom_call.1} parent=1 // pred_check_branch
      %18 = sbr.rel (0) target = $region13
    $region12: #{tpu_custom_call.1} parent=1 // pred_region
      _
    $region13: #{tpu_custom_call.1} parent=1 // pred_fallthru
      _
    // Predicated region
    $region14: #{tpu_custom_call.1} parent=1 // pred_check
      _
    $region15: #{tpu_custom_call.1} parent=1 // pred_check_branch
      %20 = sbr.rel (0) target = $region17
    $region16: #{tpu_custom_call.1} parent=1 // pred_region
      _
    $region17: #{tpu_custom_call.1} parent=1 // pred_fallthru
      _
    // Predicated region
    $region18: #{tpu_custom_call.1} parent=1 // pred_check
      _
    $region19: #{tpu_custom_call.1} parent=1 // pred_check_branch
      %22 = sbr.rel (0) target = $region21
    $region20: #{tpu_custom_call.1} parent=1 // pred_region
      _
    $region21: #{tpu_custom_call.1} parent=1 // pred_fallthru
      _
    // Predicated region
    $region22: #{tpu_custom_call.1} parent=1 // pred_check
      _
    $region23: #{tpu_custom_call.1} parent=1 // pred_check_branch
      %24 = sbr.rel (0) target = $region25
    $region24: #{tpu_custom_call.1} parent=1 // pred_region
      _
    $region25: #{tpu_custom_call.1} parent=1 // pred_fallthru
      _
    // Predicated region
    $region26: #{tpu_custom_call.1} parent=1 // pred_check
      _
    $region27: #{tpu_custom_call.1} parent=1 // pred_check_branch
      %26 = sbr.rel (0) target = $region29
    $region28: #{tpu_custom_call.1} parent=1 // pred_region
      _
    $region29: #{tpu_custom_call.1} parent=1 // pred_fallthru
      _
    %v27 = vld [vmem:[%s0] sm:$0xf]
    %v28 = vld [vmem:[%s2] sm:$0xff]
    %v29 = vld [vmem:[%s2 + $0x8] sm:$0xff]
    %v30 = vld [vmem:[%s2 + $0x10] sm:$0xff]
    %v31 = vld [vmem:[%s2 + $0x18] sm:$0xff]
    %v32 = vld [vmem:[%s1] sm:$0x3]
    %v33 = vlaneseq
    %v34 = vshrl.u32 %v33, 7
    %v35 = vadd.s32 %v34, 8
    %v36 = vadd.s32 %v34, 16
    %v37 = vlaneseq
    %v38 = vshrl.u32 %v37, 7
    %v39 = vsub.s32 0, %v38
    %v40 = vrot.slane %v32, %v39
    %vm41 = vcmp.eq.s32.totalorder %v40, %v34
    %vm42 = vcmp.eq.s32.totalorder %v40, %v35
    %vm43 = vcmp.eq.s32.totalorder %v40, %v36
    %v44 = vlaneseq
    %v45 = vshrl.u32 %v44, 7
    %v46 = vsub.s32 1, %v45
    %v47 = vrot.slane %v32, %v46
    %vm48 = vcmp.eq.s32.totalorder %v47, %v34
    %vm49 = vcmp.eq.s32.totalorder %v47, %v35
    %vm50 = vcmp.eq.s32.totalorder %v47, %v36
    %vm51 = vmor %vm41, %vm48
    %vm52 = vmor %vm42, %vm49
    %vm53 = vmor %vm43, %vm50
    %v54 = vsel %vm51, 1, 0
    %v55 = vsel %vm52, 1, 0
    %v56 = vsel %vm53, 1, 0
    %v57 = vcvt.s32.f32 %v54
    %v58 = vcvt.s32.f32 %v55
    %v59 = vcvt.s32.f32 %v56
    %v60 = vld [vmem:[%s3] sm:$0xff]
    %v61 = vld [vmem:[%s3 + $0x8] sm:$0xff]
    %v62 = vld [vmem:[%s3 + $0x10] sm:$0xff]
    %v63 = vld [vmem:[%s3 + $0x18] sm:$0xff]
    %vm64 = vcmask 162816
    %v66 = vsel %vm64, %v60, 0
    %v69 = vsel %vm64, %v61, 0
    %v72 = vsel %vm64, %v62, 0
    %v75 = vsel %vm64, %v63, 0
    %vm77 = vcmask 1043456
    %v79 = vsel %vm77, %v59, 0
    %81 = vmatprep.subr.mxu0 0.0
    %82 = vmatpush1.msra.mxu0 %v57
    %83 = vmatprep.subr.mxu0 0.0
    %84 = vmatpush1.msra.mxu0 %v58
    %85 = vmatprep.subr.mxu0 0.0
    %86 = vmatpush1.msra.mxu0 %v79
    %87 = vmatprep.subr.mxu0 0.0
    %88 = vmatpush1.msra.mxu0 0.0
    %89 = vmatprep.subr.mxu0 0.0
    %90 = vmatpush1.msra.mxu0 0.0
    %91 = vmatprep.subr.mxu0 0.0
    %92 = vmatpush1.msra.mxu0 0.0
    %93 = vmatprep.subr.mxu0 0.0
    %94 = vmatpush1.msra.mxu0 0.0
    %95 = vmatprep.subr.mxu0 0.0
    %96 = vmatpush1.msra.mxu0 0.0
    %97 = vmatprep.subr.mxu0 0.0
    %98 = vmatpush1.msra.mxu0 0.0
    %99 = vmatprep.subr.mxu0 0.0
    %100 = vmatpush1.msra.mxu0 0.0
    %101 = vmatprep.subr.mxu0 0.0
    %102 = vmatpush1.msra.mxu0 0.0
    %103 = vmatprep.subr.mxu0 0.0
    %104 = vmatpush1.msra.mxu0 0.0
    %105 = vmatprep.subr.mxu0 0.0
    %106 = vmatpush1.msra.mxu0 0.0
    %107 = vmatprep.subr.mxu0 0.0
    %108 = vmatpush1.msra.mxu0 0.0
    %109 = vmatprep.subr.mxu0 0.0
    %110 = vmatpush1.msra.mxu0 0.0
    %111 = vmatprep.subr.mxu0 0.0
    %112 = vmatpush1.msra.mxu0 0.0
    %113 = vmatprep.subr.mxu0 0.0
    %114 = vmatpush1.msra.mxu0 0.0
    %115 = vmatprep.subr.mxu0 0.0
    %116 = vmatpush1.msra.mxu0 0.0
    %117 = vmatprep.subr.mxu0 0.0
    %118 = vmatpush1.msra.mxu0 0.0
    %119 = vmatprep.subr.mxu0 0.0
    %120 = vmatpush1.msra.mxu0 0.0
    %121 = vmatprep.subr.mxu0 0.0
    %122 = vmatpush1.msra.mxu0 0.0
    %123 = vmatprep.subr.mxu0 0.0
    %124 = vmatpush1.msra.mxu0 0.0
    %125 = vmatprep.subr.mxu0 0.0
    %126 = vmatpush1.msra.mxu0 0.0
    %127 = vmatprep.subr.mxu0 0.0
    %128 = vmatpush1.msra.mxu0 0.0
    %129 = vmatprep.subr.mxu0 0.0
    %130 = vmatpush1.msra.mxu0 0.0
    %131 = vmatprep.subr.mxu0 0.0
    %132 = vmatpush1.msra.mxu0 0.0
    %133 = vmatprep.subr.mxu0 0.0
    %134 = vmatpush1.msra.mxu0 0.0
    %135 = vmatprep.subr.mxu0 0.0
    %136 = vmatpush1.msra.mxu0 0.0
    %137 = vmatprep.subr.mxu0 0.0
    %138 = vmatpush1.msra.mxu0 0.0
    %139 = vmatprep.subr.mxu0 0.0
    %140 = vmatpush1.msra.mxu0 0.0
    %141 = vmatprep.subr.mxu0 0.0
    %142 = vmatpush1.msra.mxu0 0.0
    %143 = vmatprep.subr.mxu0 0.0
    %144 = vmatpush1.msra.mxu0 0.0
    %145 = vmatprep.mubr.f32.mxu0 0.0
    %146 = vmatmul.mubr.f32.gmra.mrb[0].mxu0 %v66
    %v147 = vpop.f32.mrb[0].mxu0
    %v148 = vadd.f32 0.0, %v147
    %v149 = vpop.f32.mrb[0].mxu0
    %150 = vmatprep.mubr.f32.mxu0 0.0
    %151 = vmatmul.mubr.f32.gmra.mrb[0].mxu0 %v69
    %v152 = vpop.f32.mrb[0].mxu0
    %v153 = vadd.f32 0.0, %v152
    %v154 = vpop.f32.mrb[0].mxu0
    %155 = vmatprep.mubr.f32.mxu0 0.0
    %156 = vmatmul.mubr.f32.gmra.mrb[0].mxu0 %v72
    %v157 = vpop.f32.mrb[0].mxu0
    %v158 = vadd.f32 0.0, %v157
    %v159 = vpop.f32.mrb[0].mxu0
    %160 = vmatprep.mubr.f32.mxu0 0.0
    %161 = vmatmul.mubr.f32.gmra.mrb[0].mxu0 %v75
    %v162 = vpop.f32.mrb[0].mxu0
    %v163 = vadd.f32 0.0, %v162
    %v164 = vpop.f32.mrb[0].mxu0
    %165 = vdwg.mxu0
    %vm166 = vcmask 31744
    %v168 = vsel %vm166, %v28, 0
    %v171 = vsel %vm166, %v29, 0
    %v174 = vsel %vm166, %v30, 0
    %v177 = vsel %vm166, %v31, 0
    %v180 = vsel %vm77, %v27, 0
    %182 = vmatprep.subr.mxu0 0.0
    %183 = vmatpush1.msra.mxu0 %v180
    %184 = vmatprep.subr.mxu0 0.0
    %185 = vmatpush1.msra.mxu0 0.0
    %186 = vmatprep.subr.mxu0 0.0
    %187 = vmatpush1.msra.mxu0 0.0
    %188 = vmatprep.subr.mxu0 0.0
    %189 = vmatpush1.msra.mxu0 0.0
    %190 = vmatprep.subr.mxu0 0.0
    %191 = vmatpush1.msra.mxu0 0.0
    %192 = vmatprep.subr.mxu0 0.0
    %193 = vmatpush1.msra.mxu0 0.0
    %194 = vmatprep.subr.mxu0 0.0
    %195 = vmatpush1.msra.mxu0 0.0
    %196 = vmatprep.subr.mxu0 0.0
    %197 = vmatpush1.msra.mxu0 0.0
    %198 = vmatprep.subr.mxu0 0.0
    %199 = vmatpush1.msra.mxu0 0.0
    %200 = vmatprep.subr.mxu0 0.0
    %201 = vmatpush1.msra.mxu0 0.0
    %202 = vmatprep.subr.mxu0 0.0
    %203 = vmatpush1.msra.mxu0 0.0
    %204 = vmatprep.subr.mxu0 0.0
    %205 = vmatpush1.msra.mxu0 0.0
    %206 = vmatprep.subr.mxu0 0.0
    %207 = vmatpush1.msra.mxu0 0.0
    %208 = vmatprep.subr.mxu0 0.0
    %209 = vmatpush1.msra.mxu0 0.0
    %210 = vmatprep.subr.mxu0 0.0
    %211 = vmatpush1.msra.mxu0 0.0
    %212 = vmatprep.subr.mxu0 0.0
    %213 = vmatpush1.msra.mxu0 0.0
    %214 = vmatprep.subr.mxu0 0.0
    %215 = vmatpush1.msra.mxu0 0.0
    %216 = vmatprep.subr.mxu0 0.0
    %217 = vmatpush1.msra.mxu0 0.0
    %218 = vmatprep.subr.mxu0 0.0
    %219 = vmatpush1.msra.mxu0 0.0
    %220 = vmatprep.subr.mxu0 0.0
    %221 = vmatpush1.msra.mxu0 0.0
    %222 = vmatprep.subr.mxu0 0.0
    %223 = vmatpush1.msra.mxu0 0.0
    %224 = vmatprep.subr.mxu0 0.0
    %225 = vmatpush1.msra.mxu0 0.0
    %226 = vmatprep.subr.mxu0 0.0
    %227 = vmatpush1.msra.mxu0 0.0
    %228 = vmatprep.subr.mxu0 0.0
    %229 = vmatpush1.msra.mxu0 0.0
    %230 = vmatprep.subr.mxu0 0.0
    %231 = vmatpush1.msra.mxu0 0.0
    %232 = vmatprep.subr.mxu0 0.0
    %233 = vmatpush1.msra.mxu0 0.0
    %234 = vmatprep.subr.mxu0 0.0
    %235 = vmatpush1.msra.mxu0 0.0
    %236 = vmatprep.subr.mxu0 0.0
    %237 = vmatpush1.msra.mxu0 0.0
    %238 = vmatprep.subr.mxu0 0.0
    %239 = vmatpush1.msra.mxu0 0.0
    %240 = vmatprep.subr.mxu0 0.0
    %241 = vmatpush1.msra.mxu0 0.0
    %242 = vmatprep.subr.mxu0 0.0
    %243 = vmatpush1.msra.mxu0 0.0
    %244 = vmatprep.subr.mxu0 0.0
    %245 = vmatpush1.msra.mxu0 0.0
    %246 = vmatprep.mubr.f32.mxu0 0.0
    %247 = vmatmul.mubr.f32.gmra.mrb[0].mxu0 %v168
    %v248 = vpop.f32.mrb[0].mxu0
    %v249 = vadd.f32 %v148, %v248
    %v250 = vpop.f32.mrb[0].mxu0
    %251 = vmatprep.mubr.f32.mxu0 0.0
    %252 = vmatmul.mubr.f32.gmra.mrb[0].mxu0 %v171
    %v253 = vpop.f32.mrb[0].mxu0
    %v254 = vadd.f32 %v153, %v253
    %v255 = vpop.f32.mrb[0].mxu0
    %256 = vmatprep.mubr.f32.mxu0 0.0
    %257 = vmatmul.mubr.f32.gmra.mrb[0].mxu0 %v174
    %v258 = vpop.f32.mrb[0].mxu0
    %v259 = vadd.f32 %v158, %v258
    %v260 = vpop.f32.mrb[0].mxu0
    %261 = vmatprep.mubr.f32.mxu0 0.0
    %262 = vmatmul.mubr.f32.gmra.mrb[0].mxu0 %v177
    %v263 = vpop.f32.mrb[0].mxu0
    %v264 = vadd.f32 %v163, %v263
    %v265 = vpop.f32.mrb[0].mxu0
    %266 = vdwg.mxu0
    %v267 = vld [vmem:[%s4] sm:$0xff]
    %v268 = vld [vmem:[%s4 + $0x8] sm:$0xff]
    %v269 = vld [vmem:[%s4 + $0x10] sm:$0xff]
    %v270 = vld [vmem:[%s4 + $0x18] sm:$0xff]
    %272 = vset.pattern.permute.xlu0 0
    %273 = vperm.xlu0 %272, %v267
    %v274 = vpop.permute.xlu0 %273
    %277 = vset.pattern.permute.xlu0 0
    %278 = vperm.xlu0 %277, %v268
    %v279 = vpop.permute.xlu0 %278
    %282 = vset.pattern.permute.xlu0 0
    %283 = vperm.xlu0 %282, %v269
    %v284 = vpop.permute.xlu0 %283
    %287 = vset.pattern.permute.xlu0 0
    %288 = vperm.xlu0 %287, %v270
    %v289 = vpop.permute.xlu0 %288
    %v291 = vadd.f32 %v249, %v274
    %v292 = vadd.f32 %v254, %v279
    %v293 = vadd.f32 %v259, %v284
    %v294 = vadd.f32 %v264, %v289
    %v295 = vmax.f32 %v291, 0.0
    %v296 = vmax.f32 %v292, 0.0
    %v297 = vmax.f32 %v293, 0.0
    %v298 = vmax.f32 %v294, 0.0
    %v299 = vld [vmem:[%s5] sm:$0xff]
    %v300 = vld [vmem:[%s6] sm:$0xff]
    %302 = vset.pattern.permute.xlu0 0
    %303 = vperm.xlu0 %302, %v300
    %v304 = vpop.permute.xlu0 %303
    %vm306 = vcmask 261120
    %v308 = vsel %vm306, %v299, 0
    %310 = vmatprep.subr.mxu0 0.0
    %311 = vmatpush1.msra.mxu0 %v295
    %312 = vmatprep.subr.mxu0 0.0
    %313 = vmatpush1.msra.mxu0 %v296
    %314 = vmatprep.subr.mxu0 0.0
    %315 = vmatpush1.msra.mxu0 %v297
    %316 = vmatprep.subr.mxu0 0.0
    %317 = vmatpush1.msra.mxu0 %v298
    %318 = vmatprep.subr.mxu0 0.0
    %319 = vmatpush1.msra.mxu0 0.0
    %320 = vmatprep.subr.mxu0 0.0
    %321 = vmatpush1.msra.mxu0 0.0
    %322 = vmatprep.subr.mxu0 0.0
    %323 = vmatpush1.msra.mxu0 0.0
    %324 = vmatprep.subr.mxu0 0.0
    %325 = vmatpush1.msra.mxu0 0.0
    %326 = vmatprep.subr.mxu0 0.0
    %327 = vmatpush1.msra.mxu0 0.0
    %328 = vmatprep.subr.mxu0 0.0
    %329 = vmatpush1.msra.mxu0 0.0
    %330 = vmatprep.subr.mxu0 0.0
    %331 = vmatpush1.msra.mxu0 0.0
    %332 = vmatprep.subr.mxu0 0.0
    %333 = vmatpush1.msra.mxu0 0.0
    %334 = vmatprep.subr.mxu0 0.0
    %335 = vmatpush1.msra.mxu0 0.0
    %336 = vmatprep.subr.mxu0 0.0
    %337 = vmatpush1.msra.mxu0 0.0
    %338 = vmatprep.subr.mxu0 0.0
    %339 = vmatpush1.msra.mxu0 0.0
    %340 = vmatprep.subr.mxu0 0.0
    %341 = vmatpush1.msra.mxu0 0.0
    %342 = vmatprep.subr.mxu0 0.0
    %343 = vmatpush1.msra.mxu0 0.0
    %344 = vmatprep.subr.mxu0 0.0
    %345 = vmatpush1.msra.mxu0 0.0
    %346 = vmatprep.subr.mxu0 0.0
    %347 = vmatpush1.msra.mxu0 0.0
    %348 = vmatprep.subr.mxu0 0.0
    %349 = vmatpush1.msra.mxu0 0.0
    %350 = vmatprep.subr.mxu0 0.0
    %351 = vmatpush1.msra.mxu0 0.0
    %352 = vmatprep.subr.mxu0 0.0
    %353 = vmatpush1.msra.mxu0 0.0
    %354 = vmatprep.subr.mxu0 0.0
    %355 = vmatpush1.msra.mxu0 0.0
    %356 = vmatprep.subr.mxu0 0.0
    %357 = vmatpush1.msra.mxu0 0.0
    %358 = vmatprep.subr.mxu0 0.0
    %359 = vmatpush1.msra.mxu0 0.0
    %360 = vmatprep.subr.mxu0 0.0
    %361 = vmatpush1.msra.mxu0 0.0
    %362 = vmatprep.subr.mxu0 0.0
    %363 = vmatpush1.msra.mxu0 0.0
    %364 = vmatprep.subr.mxu0 0.0
    %365 = vmatpush1.msra.mxu0 0.0
    %366 = vmatprep.subr.mxu0 0.0
    %367 = vmatpush1.msra.mxu0 0.0
    %368 = vmatprep.subr.mxu0 0.0
    %369 = vmatpush1.msra.mxu0 0.0
    %370 = vmatprep.subr.mxu0 0.0
    %371 = vmatpush1.msra.mxu0 0.0
    %372 = vmatprep.subr.mxu0 0.0
    %373 = vmatpush1.msra.mxu0 0.0
    %374 = vmatprep.mubr.f32.mxu0 0.0
    %375 = vmatmul.mubr.f32.gmra.mrb[0].mxu0 %v308
    %v376 = vpop.f32.mrb[0].mxu0
    %v377 = vadd.f32 %v304, %v376
    %v378 = vpop.f32.mrb[0].mxu0
    %379 = vdwg.mxu0
    %vm380 = vcmask 64512
    %381 = vst.msk [vmem:[#allocation2] sm:$0xff] %vm380, %v377
    // Predicated region
    $region30: #{tpu_custom_call.1} parent=1 // pred_check
      _
    $region31: #{tpu_custom_call.1} parent=1 // pred_check_branch
      %383 = sbr.rel (0) target = $region33
    $region32: #{tpu_custom_call.1} parent=1 // pred_region
      %s385 = ssub.s32 128, 128
      %386 = vsyncadd [#allocation3], %s385
      %s388 = sshll.u32 [#allocation2], 4
      %s389 = int_to_ptr.vmem [resolvable:$true] %s388
      %391 = dma.vmem_to_hbm [thread:$0]  %s389, 128, %s7, [#allocation3]
    $region33: #{tpu_custom_call.1} parent=1 // pred_fallthru
      _
    // Predicated region
    $region34: #{tpu_custom_call.1} parent=1 // pred_check
      _
    $region35: #{tpu_custom_call.1} parent=1 // pred_check_branch
      %393 = sbr.rel (0) target = $region37
    $region36: #{tpu_custom_call.1} parent=1 // pred_region
      %394 = dma.done [#allocation3], 128
    $region37: #{tpu_custom_call.1} parent=1 // pred_fallthru
      _
    %395 = vsyncpa [#allocation3], 1

// kernel: tpu_custom_call.1
$region0: #{tpu_custom_call.1}
  #allocation0 [shape = 'u32[]', space=smem, size = 0x4, offset = 0x4, fixed_abs, tag = 'smem constant byte address 0x4 - core index']
  #allocation1 [shape = 'u32[144,128]{1,0:T(1,128)}', space=vmem, size = 0x12000, scoped, tag = 'internal scratch']
  %s0 = inlined_call_operand.vmem [shape: f32[4,8], index: 0, kind: input, shape index: {}]
  %s1 = inlined_call_operand.vmem [shape: s32[2,8], index: 1, kind: input, shape index: {}]
  %s2 = inlined_call_operand.vmem [shape: f32[32,4], index: 2, kind: input, shape index: {}]
  %s3 = inlined_call_operand.vmem [shape: f32[32,20], index: 3, kind: input, shape index: {}]
  %s4 = inlined_call_operand.vmem [shape: f32[32,1], index: 4, kind: input, shape index: {}]
  %s5 = inlined_call_operand.vmem [shape: f32[8,32], index: 5, kind: input, shape index: {}]
  %s6 = inlined_call_operand.vmem [shape: f32[8,1], index: 6, kind: input, shape index: {}]
  %s7 = inlined_call_operand.hbm [shape: f32[8,8], index: 7, kind: output, shape index: {}]
  %s8 = sld [smem:[#allocation0]]
  $region38: #{tpu_custom_call.1} parent=0
    _
  %s10 = ssub.s32 1, %s8
  %s11 = scalar_select 0, %s10, %s8
  $region1: #{tpu_custom_call.1} parent=0
    #allocation2 [shape = 'u8[4096]{0}', space=vmem, size = 0x1000, scoped, tag = 'output window, operand 0, single buffered']
    #allocation3 [shape = 's32[1]{0}', space=sflag, size = 0x4, scoped, tag = 'scoped memory for tpu_custom_call.1']
    %12 = vsyncpa [#allocation3], 0
    // Predicated region
    $region2: #{tpu_custom_call.1} parent=1 // pred_check
      _
    $region3: #{tpu_custom_call.1} parent=1 // pred_check_branch
      %14 = sbr.rel (0) target = $region5
    $region4: #{tpu_custom_call.1} parent=1 // pred_region
      _
    $region5: #{tpu_custom_call.1} parent=1 // pred_fallthru
      _
    // Predicated region
    $region6: #{tpu_custom_call.1} parent=1 // pred_check
      _
    $region7: #{tpu_custom_call.1} parent=1 // pred_check_branch
      %16 = sbr.rel (0) target = $region9
    $region8: #{tpu_custom_call.1} parent=1 // pred_region
      _
    $region9: #{tpu_custom_call.1} parent=1 // pred_fallthru
      _
    // Predicated region
    $region10: #{tpu_custom_call.1} parent=1 // pred_check
      _
    $region11: #{tpu_custom_call.1} parent=1 // pred_check_branch
      %18 = sbr.rel (0) target = $region13
    $region12: #{tpu_custom_call.1} parent=1 // pred_region
      _
    $region13: #{tpu_custom_call.1} parent=1 // pred_fallthru
      _
    // Predicated region
    $region14: #{tpu_custom_call.1} parent=1 // pred_check
      _
    $region15: #{tpu_custom_call.1} parent=1 // pred_check_branch
      %20 = sbr.rel (0) target = $region17
    $region16: #{tpu_custom_call.1} parent=1 // pred_region
      _
    $region17: #{tpu_custom_call.1} parent=1 // pred_fallthru
      _
    // Predicated region
    $region18: #{tpu_custom_call.1} parent=1 // pred_check
      _
    $region19: #{tpu_custom_call.1} parent=1 // pred_check_branch
      %22 = sbr.rel (0) target = $region21
    $region20: #{tpu_custom_call.1} parent=1 // pred_region
      _
    $region21: #{tpu_custom_call.1} parent=1 // pred_fallthru
      _
    // Predicated region
    $region22: #{tpu_custom_call.1} parent=1 // pred_check
      _
    $region23: #{tpu_custom_call.1} parent=1 // pred_check_branch
      %24 = sbr.rel (0) target = $region25
    $region24: #{tpu_custom_call.1} parent=1 // pred_region
      _
    $region25: #{tpu_custom_call.1} parent=1 // pred_fallthru
      _
    // Predicated region
    $region26: #{tpu_custom_call.1} parent=1 // pred_check
      _
    $region27: #{tpu_custom_call.1} parent=1 // pred_check_branch
      %26 = sbr.rel (0) target = $region29
    $region28: #{tpu_custom_call.1} parent=1 // pred_region
      _
    $region29: #{tpu_custom_call.1} parent=1 // pred_fallthru
      _
    %v27 = vld [vmem:[%s0] sm:$0xf]
    %v28 = vld [vmem:[%s2] sm:$0xff]
    %v29 = vld [vmem:[%s2 + $0x8] sm:$0xff]
    %v30 = vld [vmem:[%s2 + $0x10] sm:$0xff]
    %v31 = vld [vmem:[%s2 + $0x18] sm:$0xff]
    %v32 = vld [vmem:[%s1] sm:$0x3]
    %v33 = vlaneseq
    %v34 = vshrl.u32 %v33, 7
    %v35 = vadd.s32 %v34, 8
    %v36 = vadd.s32 %v34, 16
    %v37 = vlaneseq
    %v38 = vshrl.u32 %v37, 7
    %v39 = vsub.s32 0, %v38
    %v40 = vrot.slane %v32, %v39
    %vm41 = vcmp.eq.s32.totalorder %v40, %v34
    %vm42 = vcmp.eq.s32.totalorder %v40, %v35
    %vm43 = vcmp.eq.s32.totalorder %v40, %v36
    %v44 = vlaneseq
    %v45 = vshrl.u32 %v44, 7
    %v46 = vsub.s32 1, %v45
    %v47 = vrot.slane %v32, %v46
    %vm48 = vcmp.eq.s32.totalorder %v47, %v34
    %vm49 = vcmp.eq.s32.totalorder %v47, %v35
    %vm50 = vcmp.eq.s32.totalorder %v47, %v36
    %vm51 = vmor %vm41, %vm48
    %vm52 = vmor %vm42, %vm49
    %vm53 = vmor %vm43, %vm50
    %v54 = vsel %vm51, 1, 0
    %v55 = vsel %vm52, 1, 0
    %v56 = vsel %vm53, 1, 0
    %v57 = vcvt.s32.f32 %v54
    %v58 = vcvt.s32.f32 %v55
    %v59 = vcvt.s32.f32 %v56
    %v60 = vld [vmem:[%s3] sm:$0xff]
    %v61 = vld [vmem:[%s3 + $0x8] sm:$0xff]
    %v62 = vld [vmem:[%s3 + $0x10] sm:$0xff]
    %v63 = vld [vmem:[%s3 + $0x18] sm:$0xff]
    %vm64 = vcmask 162816
    %v66 = vsel %vm64, %v60, 0
    %v69 = vsel %vm64, %v61, 0
    %v72 = vsel %vm64, %v62, 0
    %v75 = vsel %vm64, %v63, 0
    %vm77 = vcmask 1043456
    %v79 = vsel %vm77, %v59, 0
    %81 = vmatprep.subr.mxu0 0.0
    %82 = vmatpush1.msra.mxu0 %v57
    %83 = vmatprep.subr.mxu0 0.0
    %84 = vmatpush1.msra.mxu0 %v58
    %85 = vmatprep.subr.mxu0 0.0
    %86 = vmatpush1.msra.mxu0 %v79
    %87 = vmatprep.subr.mxu0 0.0
    %88 = vmatpush1.msra.mxu0 0.0
    %89 = vmatprep.subr.mxu0 0.0
    %90 = vmatpush1.msra.mxu0 0.0
    %91 = vmatprep.subr.mxu0 0.0
    %92 = vmatpush1.msra.mxu0 0.0
    %93 = vmatprep.subr.mxu0 0.0
    %94 = vmatpush1.msra.mxu0 0.0
    %95 = vmatprep.subr.mxu0 0.0
    %96 = vmatpush1.msra.mxu0 0.0
    %97 = vmatprep.subr.mxu0 0.0
    %98 = vmatpush1.msra.mxu0 0.0
    %99 = vmatprep.subr.mxu0 0.0
    %100 = vmatpush1.msra.mxu0 0.0
    %101 = vmatprep.subr.mxu0 0.0
    %102 = vmatpush1.msra.mxu0 0.0
    %103 = vmatprep.subr.mxu0 0.0
    %104 = vmatpush1.msra.mxu0 0.0
    %105 = vmatprep.subr.mxu0 0.0
    %106 = vmatpush1.msra.mxu0 0.0
    %107 = vmatprep.subr.mxu0 0.0
    %108 = vmatpush1.msra.mxu0 0.0
    %109 = vmatprep.subr.mxu0 0.0
    %110 = vmatpush1.msra.mxu0 0.0
    %111 = vmatprep.subr.mxu0 0.0
    %112 = vmatpush1.msra.mxu0 0.0
    %113 = vmatprep.subr.mxu0 0.0
    %114 = vmatpush1.msra.mxu0 0.0
    %115 = vmatprep.subr.mxu0 0.0
    %116 = vmatpush1.msra.mxu0 0.0
    %117 = vmatprep.subr.mxu0 0.0
    %118 = vmatpush1.msra.mxu0 0.0
    %119 = vmatprep.subr.mxu0 0.0
    %120 = vmatpush1.msra.mxu0 0.0
    %121 = vmatprep.subr.mxu0 0.0
    %122 = vmatpush1.msra.mxu0 0.0
    %123 = vmatprep.subr.mxu0 0.0
    %124 = vmatpush1.msra.mxu0 0.0
    %125 = vmatprep.subr.mxu0 0.0
    %126 = vmatpush1.msra.mxu0 0.0
    %127 = vmatprep.subr.mxu0 0.0
    %128 = vmatpush1.msra.mxu0 0.0
    %129 = vmatprep.subr.mxu0 0.0
    %130 = vmatpush1.msra.mxu0 0.0
    %131 = vmatprep.subr.mxu0 0.0
    %132 = vmatpush1.msra.mxu0 0.0
    %133 = vmatprep.subr.mxu0 0.0
    %134 = vmatpush1.msra.mxu0 0.0
    %135 = vmatprep.subr.mxu0 0.0
    %136 = vmatpush1.msra.mxu0 0.0
    %137 = vmatprep.subr.mxu0 0.0
    %138 = vmatpush1.msra.mxu0 0.0
    %139 = vmatprep.subr.mxu0 0.0
    %140 = vmatpush1.msra.mxu0 0.0
    %141 = vmatprep.subr.mxu0 0.0
    %142 = vmatpush1.msra.mxu0 0.0
    %143 = vmatprep.subr.mxu0 0.0
    %144 = vmatpush1.msra.mxu0 0.0
    %145 = vmatprep.mubr.f32.mxu0 0.0
    %146 = vmatmul.mubr.f32.gmra.mrb[0].mxu0 %v66
    %v147 = vpop.f32.mrb[0].mxu0
    %v148 = vadd.f32 0.0, %v147
    %v149 = vpop.f32.mrb[0].mxu0
    %150 = vmatprep.mubr.f32.mxu0 0.0
    %151 = vmatmul.mubr.f32.gmra.mrb[0].mxu0 %v69
    %v152 = vpop.f32.mrb[0].mxu0
    %v153 = vadd.f32 0.0, %v152
    %v154 = vpop.f32.mrb[0].mxu0
    %155 = vmatprep.mubr.f32.mxu0 0.0
    %156 = vmatmul.mubr.f32.gmra.mrb[0].mxu0 %v72
    %v157 = vpop.f32.mrb[0].mxu0
    %v158 = vadd.f32 0.0, %v157
    %v159 = vpop.f32.mrb[0].mxu0
    %160 = vmatprep.mubr.f32.mxu0 0.0
    %161 = vmatmul.mubr.f32.gmra.mrb[0].mxu0 %v75
    %v162 = vpop.f32.mrb[0].mxu0
    %v163 = vadd.f32 0.0, %v162
    %v164 = vpop.f32.mrb[0].mxu0
    %165 = vdwg.mxu0
    %vm166 = vcmask 31744
    %v168 = vsel %vm166, %v28, 0
    %v171 = vsel %vm166, %v29, 0
    %v174 = vsel %vm166, %v30, 0
    %v177 = vsel %vm166, %v31, 0
    %v180 = vsel %vm77, %v27, 0
    %182 = vmatprep.subr.mxu0 0.0
    %183 = vmatpush1.msra.mxu0 %v180
    %184 = vmatprep.subr.mxu0 0.0
    %185 = vmatpush1.msra.mxu0 0.0
    %186 = vmatprep.subr.mxu0 0.0
    %187 = vmatpush1.msra.mxu0 0.0
    %188 = vmatprep.subr.mxu0 0.0
    %189 = vmatpush1.msra.mxu0 0.0
    %190 = vmatprep.subr.mxu0 0.0
    %191 = vmatpush1.msra.mxu0 0.0
    %192 = vmatprep.subr.mxu0 0.0
    %193 = vmatpush1.msra.mxu0 0.0
    %194 = vmatprep.subr.mxu0 0.0
    %195 = vmatpush1.msra.mxu0 0.0
    %196 = vmatprep.subr.mxu0 0.0
    %197 = vmatpush1.msra.mxu0 0.0
    %198 = vmatprep.subr.mxu0 0.0
    %199 = vmatpush1.msra.mxu0 0.0
    %200 = vmatprep.subr.mxu0 0.0
    %201 = vmatpush1.msra.mxu0 0.0
    %202 = vmatprep.subr.mxu0 0.0
    %203 = vmatpush1.msra.mxu0 0.0
    %204 = vmatprep.subr.mxu0 0.0
    %205 = vmatpush1.msra.mxu0 0.0
    %206 = vmatprep.subr.mxu0 0.0
    %207 = vmatpush1.msra.mxu0 0.0
    %208 = vmatprep.subr.mxu0 0.0
    %209 = vmatpush1.msra.mxu0 0.0
    %210 = vmatprep.subr.mxu0 0.0
    %211 = vmatpush1.msra.mxu0 0.0
    %212 = vmatprep.subr.mxu0 0.0
    %213 = vmatpush1.msra.mxu0 0.0
    %214 = vmatprep.subr.mxu0 0.0
    %215 = vmatpush1.msra.mxu0 0.0
    %216 = vmatprep.subr.mxu0 0.0
    %217 = vmatpush1.msra.mxu0 0.0
    %218 = vmatprep.subr.mxu0 0.0
    %219 = vmatpush1.msra.mxu0 0.0
    %220 = vmatprep.subr.mxu0 0.0
    %221 = vmatpush1.msra.mxu0 0.0
    %222 = vmatprep.subr.mxu0 0.0
    %223 = vmatpush1.msra.mxu0 0.0
    %224 = vmatprep.subr.mxu0 0.0
    %225 = vmatpush1.msra.mxu0 0.0
    %226 = vmatprep.subr.mxu0 0.0
    %227 = vmatpush1.msra.mxu0 0.0
    %228 = vmatprep.subr.mxu0 0.0
    %229 = vmatpush1.msra.mxu0 0.0
    %230 = vmatprep.subr.mxu0 0.0
    %231 = vmatpush1.msra.mxu0 0.0
    %232 = vmatprep.subr.mxu0 0.0
    %233 = vmatpush1.msra.mxu0 0.0
    %234 = vmatprep.subr.mxu0 0.0
    %235 = vmatpush1.msra.mxu0 0.0
    %236 = vmatprep.subr.mxu0 0.0
    %237 = vmatpush1.msra.mxu0 0.0
    %238 = vmatprep.subr.mxu0 0.0
    %239 = vmatpush1.msra.mxu0 0.0
    %240 = vmatprep.subr.mxu0 0.0
    %241 = vmatpush1.msra.mxu0 0.0
    %242 = vmatprep.subr.mxu0 0.0
    %243 = vmatpush1.msra.mxu0 0.0
    %244 = vmatprep.subr.mxu0 0.0
    %245 = vmatpush1.msra.mxu0 0.0
    %246 = vmatprep.mubr.f32.mxu0 0.0
    %247 = vmatmul.mubr.f32.gmra.mrb[0].mxu0 %v168
    %v248 = vpop.f32.mrb[0].mxu0
    %v249 = vadd.f32 %v148, %v248
    %v250 = vpop.f32.mrb[0].mxu0
    %251 = vmatprep.mubr.f32.mxu0 0.0
    %252 = vmatmul.mubr.f32.gmra.mrb[0].mxu0 %v171
    %v253 = vpop.f32.mrb[0].mxu0
    %v254 = vadd.f32 %v153, %v253
    %v255 = vpop.f32.mrb[0].mxu0
    %256 = vmatprep.mubr.f32.mxu0 0.0
    %257 = vmatmul.mubr.f32.gmra.mrb[0].mxu0 %v174
    %v258 = vpop.f32.mrb[0].mxu0
    %v259 = vadd.f32 %v158, %v258
    %v260 = vpop.f32.mrb[0].mxu0
    %261 = vmatprep.mubr.f32.mxu0 0.0
    %262 = vmatmul.mubr.f32.gmra.mrb[0].mxu0 %v177
    %v263 = vpop.f32.mrb[0].mxu0
    %v264 = vadd.f32 %v163, %v263
    %v265 = vpop.f32.mrb[0].mxu0
    %266 = vdwg.mxu0
    %v267 = vld [vmem:[%s4] sm:$0xff]
    %v268 = vld [vmem:[%s4 + $0x8] sm:$0xff]
    %v269 = vld [vmem:[%s4 + $0x10] sm:$0xff]
    %v270 = vld [vmem:[%s4 + $0x18] sm:$0xff]
    %272 = vset.pattern.permute.xlu0 0
    %273 = vperm.xlu0 %272, %v267
    %v274 = vpop.permute.xlu0 %273
    %277 = vset.pattern.permute.xlu0 0
    %278 = vperm.xlu0 %277, %v268
    %v279 = vpop.permute.xlu0 %278
    %282 = vset.pattern.permute.xlu0 0
    %283 = vperm.xlu0 %282, %v269
    %v284 = vpop.permute.xlu0 %283
    %287 = vset.pattern.permute.xlu0 0
    %288 = vperm.xlu0 %287, %v270
    %v289 = vpop.permute.xlu0 %288
    %v291 = vadd.f32 %v249, %v274
    %v292 = vadd.f32 %v254, %v279
    %v293 = vadd.f32 %v259, %v284
    %v294 = vadd.f32 %v264, %v289
    %v295 = vmax.f32 %v291, 0.0
    %v296 = vmax.f32 %v292, 0.0
    %v297 = vmax.f32 %v293, 0.0
    %v298 = vmax.f32 %v294, 0.0
    %v299 = vld [vmem:[%s5] sm:$0xff]
    %v300 = vld [vmem:[%s6] sm:$0xff]
    %302 = vset.pattern.permute.xlu0 0
    %303 = vperm.xlu0 %302, %v300
    %v304 = vpop.permute.xlu0 %303
    %vm306 = vcmask 261120
    %v308 = vsel %vm306, %v299, 0
    %310 = vmatprep.subr.mxu0 0.0
    %311 = vmatpush1.msra.mxu0 %v295
    %312 = vmatprep.subr.mxu0 0.0
    %313 = vmatpush1.msra.mxu0 %v296
    %314 = vmatprep.subr.mxu0 0.0
    %315 = vmatpush1.msra.mxu0 %v297
    %316 = vmatprep.subr.mxu0 0.0
    %317 = vmatpush1.msra.mxu0 %v298
    %318 = vmatprep.subr.mxu0 0.0
    %319 = vmatpush1.msra.mxu0 0.0
    %320 = vmatprep.subr.mxu0 0.0
    %321 = vmatpush1.msra.mxu0 0.0
    %322 = vmatprep.subr.mxu0 0.0
    %323 = vmatpush1.msra.mxu0 0.0
    %324 = vmatprep.subr.mxu0 0.0
    %325 = vmatpush1.msra.mxu0 0.0
    %326 = vmatprep.subr.mxu0 0.0
    %327 = vmatpush1.msra.mxu0 0.0
    %328 = vmatprep.subr.mxu0 0.0
    %329 = vmatpush1.msra.mxu0 0.0
    %330 = vmatprep.subr.mxu0 0.0
    %331 = vmatpush1.msra.mxu0 0.0
    %332 = vmatprep.subr.mxu0 0.0
    %333 = vmatpush1.msra.mxu0 0.0
    %334 = vmatprep.subr.mxu0 0.0
    %335 = vmatpush1.msra.mxu0 0.0
    %336 = vmatprep.subr.mxu0 0.0
    %337 = vmatpush1.msra.mxu0 0.0
    %338 = vmatprep.subr.mxu0 0.0
    %339 = vmatpush1.msra.mxu0 0.0
    %340 = vmatprep.subr.mxu0 0.0
    %341 = vmatpush1.msra.mxu0 0.0
    %342 = vmatprep.subr.mxu0 0.0
    %343 = vmatpush1.msra.mxu0 0.0
    %344 = vmatprep.subr.mxu0 0.0
    %345 = vmatpush1.msra.mxu0 0.0
    %346 = vmatprep.subr.mxu0 0.0
    %347 = vmatpush1.msra.mxu0 0.0
    %348 = vmatprep.subr.mxu0 0.0
    %349 = vmatpush1.msra.mxu0 0.0
    %350 = vmatprep.subr.mxu0 0.0
    %351 = vmatpush1.msra.mxu0 0.0
    %352 = vmatprep.subr.mxu0 0.0
    %353 = vmatpush1.msra.mxu0 0.0
    %354 = vmatprep.subr.mxu0 0.0
    %355 = vmatpush1.msra.mxu0 0.0
    %356 = vmatprep.subr.mxu0 0.0
    %357 = vmatpush1.msra.mxu0 0.0
    %358 = vmatprep.subr.mxu0 0.0
    %359 = vmatpush1.msra.mxu0 0.0
    %360 = vmatprep.subr.mxu0 0.0
    %361 = vmatpush1.msra.mxu0 0.0
    %362 = vmatprep.subr.mxu0 0.0
    %363 = vmatpush1.msra.mxu0 0.0
    %364 = vmatprep.subr.mxu0 0.0
    %365 = vmatpush1.msra.mxu0 0.0
    %366 = vmatprep.subr.mxu0 0.0
    %367 = vmatpush1.msra.mxu0 0.0
    %368 = vmatprep.subr.mxu0 0.0
    %369 = vmatpush1.msra.mxu0 0.0
    %370 = vmatprep.subr.mxu0 0.0
    %371 = vmatpush1.msra.mxu0 0.0
    %372 = vmatprep.subr.mxu0 0.0
    %373 = vmatpush1.msra.mxu0 0.0
    %374 = vmatprep.mubr.f32.mxu0 0.0
    %375 = vmatmul.mubr.f32.gmra.mrb[0].mxu0 %v308
    %v376 = vpop.f32.mrb[0].mxu0
    %v377 = vadd.f32 %v304, %v376
    %v378 = vpop.f32.mrb[0].mxu0
    %379 = vdwg.mxu0
    %vm380 = vcmask 64512
    %381 = vst.msk [vmem:[#allocation2] sm:$0xff] %vm380, %v377
    // Predicated region
    $region30: #{tpu_custom_call.1} parent=1 // pred_check
      _
    $region31: #{tpu_custom_call.1} parent=1 // pred_check_branch
      %383 = sbr.rel (0) target = $region33
    $region32: #{tpu_custom_call.1} parent=1 // pred_region
      %s385 = ssub.s32 128, 128
      %386 = vsyncadd [#allocation3], %s385
      %s388 = sshll.u32 [#allocation2], 4
      %s389 = int_to_ptr.vmem [resolvable:$true] %s388
      %391 = dma.vmem_to_hbm [thread:$0]  %s389, 128, %s7, [#allocation3]
    $region33: #{tpu_custom_call.1} parent=1 // pred_fallthru
      _
    // Predicated region
    $region34: #{tpu_custom_call.1} parent=1 // pred_check
      _
    $region35: #{tpu_custom_call.1} parent=1 // pred_check_branch
      %393 = sbr.rel (0) target = $region37
    $region36: #{tpu_custom_call.1} parent=1 // pred_region
      %394 = dma.done [#allocation3], 128
    $region37: #{tpu_custom_call.1} parent=1 // pred_fallthru
      _
    %395 = vsyncpa [#allocation3], 1

</llo_original>
